<compile_context>
chip_gen: v5e
topology: v5e:2x2
jax: 0.10.0
libtpu: 0.0.40
codegen_flags: <defaults>
</compile_context>

<pallas_src>
import functools

import jax
import jax.numpy as jnp
from jax import lax
from jax.experimental import pallas as pl
from jax.experimental.pallas import tpu as pltpu


def _linear(h, w):
    # h: (bb, in), w: (out, in) -> (bb, out); contraction on dim 1 of both,
    # so weights keep their PyTorch (out, in) layout (no transpose anywhere).
    return lax.dot_general(
        h, w,
        dimension_numbers=(((1,), (1,)), ((), ())),
        preferred_element_type=jnp.float32,
    )


def _mlp_kernel(x_ref, w1_ref, w2_ref, w3_ref, w4_ref, o_ref, acc_ref):
    k = pl.program_id(1)

    @pl.when(k == 0)
    def _():
        acc_ref[...] = jnp.zeros_like(acc_ref)

    # Layer-1 partial product for this K tile: (bb, tk) x (64, tk) -> (bb, 64)
    acc_ref[...] += _linear(x_ref[...], w1_ref[...])

    @pl.when(k == pl.num_programs(1) - 1)
    def _():
        h = jnp.maximum(acc_ref[...], 0.0)                 # relu(layer 1)
        h = jnp.maximum(_linear(h, w2_ref[...]), 0.0)      # relu(layer 2)
        h = jnp.maximum(_linear(h, w3_ref[...]), 0.0)      # relu(layer 3)
        # Layer 4 with W4 zero-padded to 128 output columns -> lane-dense store.
        o_ref[...] = _linear(h, w4_ref[...]).astype(o_ref.dtype)


def _round_up(a: int, m: int) -> int:
    return (a + m - 1) // m * m


def _const_weight_spec(shape):
    """BlockSpec for a grid-invariant weight: single-buffered when supported."""
    index_map = lambda i, k: (0, 0)
    try:
        return pl.BlockSpec(shape, index_map, pipeline_mode=pl.Buffered(1))
    except (AttributeError, TypeError, ValueError):
        return pl.BlockSpec(shape, index_map)


@functools.partial(jax.jit, static_argnames=("block_b", "tk", "use_bf16_inputs"))
def hindroid_substitute_forward(x, w1, w2, w3, w4, *, block_b=512, tk=512,
                                use_bf16_inputs=False):
    """x: (B, ...) -> logits (B, 2). w1..w4 are PyTorch-convention (out, in)."""
    b = x.shape[0]
    x2d = x.reshape(b, -1)                       # x.view(B, -1)
    n_features = x2d.shape[1]
    n_hidden, n_out, out_pad = 64, 2, 128

    # ---- static tiling ------------------------------------------------------
    block_b = min(_round_up(block_b, 8), _round_up(b, 8))     # f32 sublane = 8
    b_pad = _round_up(b, block_b)
    nb = b_pad // block_b

    tk = _round_up(max(tk, 128), 128)            # lane-aligned, MXU-friendly
    tk = min(tk, _round_up(n_features, 128))
    k_pad = _round_up(n_features, tk)
    nk = k_pad // tk

    # ---- operand prep (glue; production code should cast/pad params once
    # outside jit so this never costs an extra HBM pass over the weights) ----
    stream_dtype = jnp.bfloat16 if use_bf16_inputs else jnp.float32
    x2d = x2d.astype(stream_dtype)
    w1c = w1.astype(stream_dtype)                # (64, n_features), NO transpose
    w2c = w2.astype(jnp.float32)
    w3c = w3.astype(jnp.float32)
    w4c = jnp.pad(w4.astype(jnp.float32), ((0, out_pad - n_out), (0, 0)))

    if k_pad != n_features:                      # zero K-pad: no effect on result
        x2d = jnp.pad(x2d, ((0, 0), (0, k_pad - n_features)))
        w1c = jnp.pad(w1c, ((0, 0), (0, k_pad - n_features)))
    if b_pad != b:
        x2d = jnp.pad(x2d, ((0, b_pad - b), (0, 0)))

    # ---- cost hint for the XLA scheduler ------------------------------------
    itemsize = jnp.dtype(stream_dtype).itemsize
    flops = 2 * b_pad * (k_pad * n_hidden
                         + 2 * n_hidden * n_hidden
                         + n_hidden * out_pad)
    bytes_accessed = (b_pad * k_pad * itemsize              # x stream
                      + n_hidden * k_pad * itemsize         # W1 stream
                      + (2 * n_hidden * n_hidden + out_pad * n_hidden) * 4
                      + b_pad * out_pad * 4)                # output
    cost = pl.CostEstimate(flops=int(flops), transcendentals=0,
                           bytes_accessed=int(bytes_accessed))

    out = pl.pallas_call(
        _mlp_kernel,
        out_shape=jax.ShapeDtypeStruct((b_pad, out_pad), jnp.float32),
        grid_spec=pltpu.PrefetchScalarGridSpec(
            num_scalar_prefetch=0,
            grid=(nb, nk),                       # batch (parallel), K (arbitrary, last)
            in_specs=[
                pl.BlockSpec((block_b, tk), lambda i, k: (i, k)),      # x tile
                pl.BlockSpec((n_hidden, tk), lambda i, k: (0, k)),     # W1 K tile
                _const_weight_spec((n_hidden, n_hidden)),              # W2
                _const_weight_spec((n_hidden, n_hidden)),              # W3
                _const_weight_spec((out_pad, n_hidden)),               # W4 (padded)
            ],
            out_specs=pl.BlockSpec((block_b, out_pad), lambda i, k: (i, 0)),
            scratch_shapes=[pltpu.VMEM((block_b, n_hidden), jnp.float32)],
        ),
        compiler_params=pltpu.CompilerParams(
            dimension_semantics=("parallel", "arbitrary"),
            vmem_limit_bytes=48 * 1024 * 1024,
        ),
        cost_estimate=cost,
    )(x2d, w1c, w2c, w3c, w4c)

    return out[:b, :n_out]


def _ref_forward(x, w1, w2, w3, w4):
    # Pure-JAX reference mirroring the PyTorch module.
    h = x.reshape(x.shape[0], -1).astype(jnp.float32)
    h = jnp.maximum(h @ w1.T, 0.0)
    h = jnp.maximum(h @ w2.T, 0.0)
    h = jnp.maximum(h @ w3.T, 0.0)
    return h @ w4.T


if __name__ == "__main__":
    # Small shapes consistent with the module: batch=13 (deliberately not a
    # multiple of the batch tile), features flattened from (4, 256) -> 1024.
    B, C, S = 13, 4, 256
    N_FEATURES = C * S

    key = jax.random.PRNGKey(0)
    kx, k1, k2, k3, k4 = jax.random.split(key, 5)
    x = jax.random.normal(kx, (B, C, S), dtype=jnp.float32)

    # Deterministic nn.Linear-style init: uniform(-1/sqrt(fan_in), +).
    def init_linear(k, out_f, in_f):
        bound = 1.0 / jnp.sqrt(jnp.float32(in_f))
        return jax.random.uniform(k, (out_f, in_f), jnp.float32, -bound, bound)

    w1 = init_linear(k1, 64, N_FEATURES)
    w2 = init_linear(k2, 64, 64)
    w3 = init_linear(k3, 64, 64)
    w4 = init_linear(k4, 2, 64)

    ref = _ref_forward(x, w1, w2, w3, w4)

    # f32 path with small batch tiles: exercises the full (batch, K) grid
    # (nb=2 batch steps -> both TensorCores on v7x; nk=2 K-accumulation steps,
    # plus the batch-padding path since 13 % 8 != 0).
    out = jax.block_until_ready(
        hindroid_substitute_forward(x, w1, w2, w3, w4, block_b=8, tk=512))
    assert out.shape == (B, 2), out.shape
    assert jnp.allclose(out, ref, atol=1e-3, rtol=1e-3), (
        float(jnp.max(jnp.abs(out - ref))))

    # Default (large-batch) tiling path.
    out2 = jax.block_until_ready(hindroid_substitute_forward(x, w1, w2, w3, w4))
    assert jnp.allclose(out2, ref, atol=1e-3, rtol=1e-3), (
        float(jnp.max(jnp.abs(out2 - ref))))

    # bf16 streamed-operand path: halves HBM bytes of the memory-bound layer-1
    # stream; f32 MXU accumulation, so only input-rounding error vs the f32 ref.
    out_bf = jax.block_until_ready(
        hindroid_substitute_forward(x, w1, w2, w3, w4,
                                    block_b=8, use_bf16_inputs=True))
    assert jnp.allclose(out_bf, ref, atol=1e-1, rtol=1e-1), (
        float(jnp.max(jnp.abs(out_bf - ref))))

    print("KERNEL_OK")
</pallas_src>

<mosaic_0001>
module attributes {stable_mosaic.version = 11 : i64} {
  func.func @_mlp_kernel(%arg0: i32, %arg1: i32, %arg2: memref<8x512xf32, #tpu.memory_space<vmem>>, %arg3: memref<64x512xf32, #tpu.memory_space<vmem>>, %arg4: memref<64x64xf32, #tpu.memory_space<vmem>>, %arg5: memref<64x64xf32, #tpu.memory_space<vmem>>, %arg6: memref<128x64xf32, #tpu.memory_space<vmem>>, %arg7: memref<8x128xf32, #tpu.memory_space<vmem>>, %arg8: memref<8x64xf32, #tpu.memory_space<vmem>>) attributes {dimension_semantics = [#tpu.dimension_semantics<parallel>, #tpu.dimension_semantics<arbitrary>], iteration_bounds = array<i64: 2, 2>, scalar_prefetch = 0 : i64, scratch_operands = 1 : i64, tpu.core_type = #tpu.core_type<tc>, window_params = [{transform_indices = @transform_0, window_bounds = array<i64: 8, 512>}, {transform_indices = @transform_1, window_bounds = array<i64: 64, 512>}, {pipeline_mode = #tpu.pipeline_mode<synchronous>, transform_indices = @transform_2, window_bounds = array<i64: 64, 64>}, {pipeline_mode = #tpu.pipeline_mode<synchronous>, transform_indices = @transform_3, window_bounds = array<i64: 64, 64>}, {pipeline_mode = #tpu.pipeline_mode<synchronous>, transform_indices = @transform_4, window_bounds = array<i64: 128, 64>}, {transform_indices = @transform_5, window_bounds = array<i64: 8, 128>}]} {
    %c0_i32 = arith.constant 0 : i32
    %0 = arith.cmpi eq, %arg1, %c0_i32 : i32
    %1 = arith.extui %0 : i1 to i32
    %c0_i32_0 = arith.constant 0 : i32
    %2 = arith.cmpi ne, %1, %c0_i32_0 : i32
    scf.if %2 {
      %cst_9 = arith.constant 0.000000e+00 : f32
      %12 = vector.broadcast %cst_9 : f32 to vector<8x64xf32>
      %c0_10 = arith.constant 0 : index
      %c0_11 = arith.constant 0 : index
      %13 = vector.load %arg8[%c0_10, %c0_11] : memref<8x64xf32, #tpu.memory_space<vmem>>, vector<8x64xf32>
      tpu.vector_store %arg8[%c0_10, %c0_11], %12 {strides = array<i32>} : memref<8x64xf32, #tpu.memory_space<vmem>>, vector<8x64xf32>,
    } else {
    }
    %c0 = arith.constant 0 : index
    %c0_1 = arith.constant 0 : index
    %3 = vector.load %arg8[%c0, %c0_1] : memref<8x64xf32, #tpu.memory_space<vmem>>, vector<8x64xf32>
    %c0_2 = arith.constant 0 : index
    %c0_3 = arith.constant 0 : index
    %4 = vector.load %arg2[%c0_2, %c0_3] : memref<8x512xf32, #tpu.memory_space<vmem>>, vector<8x512xf32>
    %c0_4 = arith.constant 0 : index
    %c0_5 = arith.constant 0 : index
    %5 = vector.load %arg3[%c0_4, %c0_5] : memref<64x512xf32, #tpu.memory_space<vmem>>, vector<64x512xf32>
    %cst = arith.constant dense<0.000000e+00> : vector<8x64xf32>
    %6 = tpu.matmul %4, %5, %cst {dimension_numbers = #tpu.dot_dimension_numbers<[1], [1], [0], [0], [0, 0, 1, 0], [], []>} : vector<8x512xf32>, vector<64x512xf32>, vector<8x64xf32> -> vector<8x64xf32>
    %7 = arith.addf %3, %6 : vector<8x64xf32>
    %c0_6 = arith.constant 0 : index
    %c0_7 = arith.constant 0 : index
    %8 = vector.load %arg8[%c0_6, %c0_7] : memref<8x64xf32, #tpu.memory_space<vmem>>, vector<8x64xf32>
    tpu.vector_store %arg8[%c0_6, %c0_7], %7 {strides = array<i32>} : memref<8x64xf32, #tpu.memory_space<vmem>>, vector<8x64xf32>,
    %c1_i32 = arith.constant 1 : i32
    %9 = arith.cmpi eq, %arg1, %c1_i32 : i32
    %10 = arith.extui %9 : i1 to i32
    %c0_i32_8 = arith.constant 0 : i32
    %11 = arith.cmpi ne, %10, %c0_i32_8 : i32
    scf.if %11 {
      %c0_9 = arith.constant 0 : index
      %c0_10 = arith.constant 0 : index
      %12 = vector.load %arg8[%c0_9, %c0_10] : memref<8x64xf32, #tpu.memory_space<vmem>>, vector<8x64xf32>
      %cst_11 = arith.constant 0.000000e+00 : f32
      %13 = vector.broadcast %cst_11 : f32 to vector<8x64xf32>
      %14 = arith.maximumf %12, %13 : vector<8x64xf32>
      %c0_12 = arith.constant 0 : index
      %c0_13 = arith.constant 0 : index
      %15 = vector.load %arg4[%c0_12, %c0_13] : memref<64x64xf32, #tpu.memory_space<vmem>>, vector<64x64xf32>
      %cst_14 = arith.constant dense<0.000000e+00> : vector<8x64xf32>
      %16 = tpu.matmul %14, %15, %cst_14 {dimension_numbers = #tpu.dot_dimension_numbers<[1], [1], [0], [0], [0, 0, 1, 0], [], []>} : vector<8x64xf32>, vector<64x64xf32>, vector<8x64xf32> -> vector<8x64xf32>
      %cst_15 = arith.constant 0.000000e+00 : f32
      %17 = vector.broadcast %cst_15 : f32 to vector<8x64xf32>
      %18 = arith.maximumf %16, %17 : vector<8x64xf32>
      %c0_16 = arith.constant 0 : index
      %c0_17 = arith.constant 0 : index
      %19 = vector.load %arg5[%c0_16, %c0_17] : memref<64x64xf32, #tpu.memory_space<vmem>>, vector<64x64xf32>
      %cst_18 = arith.constant dense<0.000000e+00> : vector<8x64xf32>
      %20 = tpu.matmul %18, %19, %cst_18 {dimension_numbers = #tpu.dot_dimension_numbers<[1], [1], [0], [0], [0, 0, 1, 0], [], []>} : vector<8x64xf32>, vector<64x64xf32>, vector<8x64xf32> -> vector<8x64xf32>
      %cst_19 = arith.constant 0.000000e+00 : f32
      %21 = vector.broadcast %cst_19 : f32 to vector<8x64xf32>
      %22 = arith.maximumf %20, %21 : vector<8x64xf32>
      %c0_20 = arith.constant 0 : index
      %c0_21 = arith.constant 0 : index
      %23 = vector.load %arg6[%c0_20, %c0_21] : memref<128x64xf32, #tpu.memory_space<vmem>>, vector<128x64xf32>
      %cst_22 = arith.constant dense<0.000000e+00> : vector<8x128xf32>
      %24 = tpu.matmul %22, %23, %cst_22 {dimension_numbers = #tpu.dot_dimension_numbers<[1], [1], [0], [0], [0, 0, 1, 0], [], []>} : vector<8x64xf32>, vector<128x64xf32>, vector<8x128xf32> -> vector<8x128xf32>
      %c0_23 = arith.constant 0 : index
      %c0_24 = arith.constant 0 : index
      %25 = vector.load %arg7[%c0_23, %c0_24] : memref<8x128xf32, #tpu.memory_space<vmem>>, vector<8x128xf32>
      tpu.vector_store %arg7[%c0_23, %c0_24], %24 {strides = array<i32>} : memref<8x128xf32, #tpu.memory_space<vmem>>, vector<8x128xf32>,
    } else {
    }
    return
  }
  func.func @transform_0(%arg0: i32, %arg1: i32) -> (i32, i32) {
    %c0_i32 = arith.constant 0 : i32
    return %arg0, %arg1 : i32, i32
  }
  func.func @transform_1(%arg0: i32, %arg1: i32) -> (i32, i32) {
    %c0_i32 = arith.constant 0 : i32
    %c0_i32_0 = arith.constant 0 : i32
    return %c0_i32, %arg1 : i32, i32
  }
  func.func @transform_2(%arg0: i32, %arg1: i32) -> (i32, i32) {
    %c0_i32 = arith.constant 0 : i32
    %c0_i32_0 = arith.constant 0 : i32
    %c0_i32_1 = arith.constant 0 : i32
    return %c0_i32, %c0_i32_0 : i32, i32
  }
  func.func @transform_3(%arg0: i32, %arg1: i32) -> (i32, i32) {
    %c0_i32 = arith.constant 0 : i32
    %c0_i32_0 = arith.constant 0 : i32
    %c0_i32_1 = arith.constant 0 : i32
    return %c0_i32, %c0_i32_0 : i32, i32
  }
  func.func @transform_4(%arg0: i32, %arg1: i32) -> (i32, i32) {
    %c0_i32 = arith.constant 0 : i32
    %c0_i32_0 = arith.constant 0 : i32
    %c0_i32_1 = arith.constant 0 : i32
    return %c0_i32, %c0_i32_0 : i32, i32
  }
  func.func @transform_5(%arg0: i32, %arg1: i32) -> (i32, i32) {
    %c0_i32 = arith.constant 0 : i32
    %c0_i32_0 = arith.constant 0 : i32
    return %arg0, %c0_i32 : i32, i32
  }
}

</mosaic_0001>

<llo_original>
// kernel: hindroid_substitute_forward.1
$region0: #{hindroid_substitute_forward.1}
  #allocation0 [shape = 'u32[]', space=smem, size = 0x4, offset = 0x4, fixed_abs, tag = 'smem constant byte address 0x4 - core index']
  #allocation1 [shape = 'u32[72,128]{1,0:T(1,128)}', space=vmem, size = 0x9000, scoped, tag = 'internal scratch']
  #allocation2 [shape = 'f32[8,64]{1,0:T(8,128)}', space=vmem, size = 0x1000, scoped, tag = 'scratch operand']
  %s0 = inlined_call_operand.vmem [shape: f32[16,1024], index: 0, kind: input, shape index: {}]
  %s1 = inlined_call_operand.vmem [shape: f32[64,1024], index: 1, kind: input, shape index: {}]
  %s2 = inlined_call_operand.vmem [shape: f32[64,64], index: 2, kind: input, shape index: {}]
  %s3 = inlined_call_operand.vmem [shape: f32[64,64], index: 3, kind: input, shape index: {}]
  %s4 = inlined_call_operand.vmem [shape: f32[128,64], index: 4, kind: input, shape index: {}]
  %s5 = inlined_call_operand.vmem [shape: f32[16,128], index: 5, kind: output, shape index: {}]
  %s6 = sld [smem:[#allocation0]]
  $region84: #{hindroid_substitute_forward.1} parent=0
    _
  %s8 = ssub.s32 1, %s6
  %s9 = scalar_select 0, %s8, %s6
  $region1: #{hindroid_substitute_forward.1} parent=0
    #allocation3 [shape = 'u8[262144]{0}', space=vmem, size = 0x40000, scoped, tag = 'input window, operand 1']
    loop: start=0, step=1, limit=6
    $region2: #{hindroid_substitute_forward.1} parent=1 // loop_pre_header
      _
    $region3: #{hindroid_substitute_forward.1} parent=1 // loop_header
      %s11 = sphi 0, %s15
      %p12 = scmp.ge.s32.totalorder %s11, 6
      %s18 = sphi 0, %s30
      %s19 = sphi 0, %s26
      %s20 = sphi 0, %s18
      %s21 = sphi 0, %s19
      %s22 = sphi 0, %s20
      %s23 = sphi 0, %s21
      %s35 = sphi 0, %s37
      %s38 = sphi 0, %s35
      %s39 = sphi 0, %s38
      %s55 = sphi 0, %s39
      %s61 = sphi 0, %s63
      %s64 = sphi 0, %s61
      %s65 = sphi 0, %s64
      %s81 = sphi 0, %s65
      %s85 = sphi 0, %s85
      %s87 = sphi 0, %s85
      %s88 = sphi 0, %s87
      %s102 = sphi 0, %s88
      %s106 = sphi 0, %s106
      %s108 = sphi 0, %s106
      %s109 = sphi 0, %s108
      %s123 = sphi 0, %s109
      %s127 = sphi 0, %s127
      %s129 = sphi 0, %s127
      %s130 = sphi 0, %s129
      %s144 = sphi 0, %s130
      %s150 = sphi 0, %s152
      %s153 = sphi 0, %s150
      %s154 = sphi 0, %s153
      %s170 = sphi 0, %s154
    $region4: #{hindroid_substitute_forward.1} parent=1 // loop_header_branch
      %14 = sbr.rel (%p12) target = $region8
    $region5: #{hindroid_substitute_forward.1} parent=1 // loop_body
      %s16 = ssub.s32 %s11, 1
      %s17 = ssub.s32 %s11, 2
      %s24 = sadd.s32 1, %s19
      %p25 = scmp.ge.s32.totalorder %s24, 2
      %s26 = scalar_select %p25, 0, %s24
      %s27 = sadd.s32 1, %s18
      %s28 = scalar_select %p25, %s27, %s18
      %p29 = scmp.ge.s32.totalorder %s28, 2
      %s30 = scalar_select %p29, 0, %s28
      %s31 = ssub.s32 %s18, %s30
      %s32 = ssub.s32 %s19, %s26
      %s33 = sor.u32 %s31, %s32
      %p34 = scmp.eq.s32.totalorder %s33, 0
      %s36 = sadd.s32 %s35, 1
      %s37 = scalar_select %p34, %s35, %s36
      %p40 = pneg %p34
      %p41 = scmp.eq.s32.totalorder %s11, 3
      %p42 = por %p40, %p41
      %p43 = scmp.ne.s32.totalorder %s35, %s38
      %p44 = scmp.eq.s32.totalorder %s11, 0
      %p45 = por %p43, %p44
      %p46 = scmp.ne.s32.totalorder %s35, %s38
      %p47 = scmp.eq.s32.totalorder %s16, 3
      %p48 = por %p46, %p47
      %p49 = scmp.ne.s32.totalorder %s38, %s39
      %p50 = scmp.eq.s32.totalorder %s16, 0
      %p51 = por %p49, %p50
      %p52 = scmp.ne.s32.totalorder %s38, %s39
      %p53 = scmp.eq.s32.totalorder %s17, 3
      %p54 = por %p52, %p53
      %p56 = scmp.ne.s32.totalorder %s39, %s55
      %p57 = scmp.eq.s32.totalorder %s17, 0
      %p58 = por %p56, %p57
      %s59 = ssub.s32 %s19, %s26
      %p60 = scmp.eq.s32.totalorder %s59, 0
      %s62 = sadd.s32 %s61, 1
      %s63 = scalar_select %p60, %s61, %s62
      %p66 = pneg %p60
      %p67 = scmp.eq.s32.totalorder %s11, 3
      %p68 = por %p66, %p67
      %p69 = scmp.ne.s32.totalorder %s61, %s64
      %p70 = scmp.eq.s32.totalorder %s11, 0
      %p71 = por %p69, %p70
      %p72 = scmp.ne.s32.totalorder %s61, %s64
      %p73 = scmp.eq.s32.totalorder %s16, 3
      %p74 = por %p72, %p73
      %p75 = scmp.ne.s32.totalorder %s64, %s65
      %p76 = scmp.eq.s32.totalorder %s16, 0
      %p77 = por %p75, %p76
      %p78 = scmp.ne.s32.totalorder %s64, %s65
      %p79 = scmp.eq.s32.totalorder %s17, 3
      %p80 = por %p78, %p79
      %p82 = scmp.ne.s32.totalorder %s65, %s81
      %p83 = scmp.eq.s32.totalorder %s17, 0
      %p84 = por %p82, %p83
      %s86 = sadd.s32 %s85, 1
      %p89 = scmp.eq.s32.totalorder %s11, 3
      %p90 = scmp.ne.s32.totalorder %s85, %s87
      %p91 = scmp.eq.s32.totalorder %s11, 0
      %p92 = por %p90, %p91
      %p93 = scmp.ne.s32.totalorder %s85, %s87
      %p94 = scmp.eq.s32.totalorder %s16, 3
      %p95 = por %p93, %p94
      %p96 = scmp.ne.s32.totalorder %s87, %s88
      %p97 = scmp.eq.s32.totalorder %s16, 0
      %p98 = por %p96, %p97
      %p99 = scmp.ne.s32.totalorder %s87, %s88
      %p100 = scmp.eq.s32.totalorder %s17, 3
      %p101 = por %p99, %p100
      %p103 = scmp.ne.s32.totalorder %s88, %s102
      %p104 = scmp.eq.s32.totalorder %s17, 0
      %p105 = por %p103, %p104
      %s107 = sadd.s32 %s106, 1
      %p110 = scmp.eq.s32.totalorder %s11, 3
      %p111 = scmp.ne.s32.totalorder %s106, %s108
      %p112 = scmp.eq.s32.totalorder %s11, 0
      %p113 = por %p111, %p112
      %p114 = scmp.ne.s32.totalorder %s106, %s108
      %p115 = scmp.eq.s32.totalorder %s16, 3
      %p116 = por %p114, %p115
      %p117 = scmp.ne.s32.totalorder %s108, %s109
      %p118 = scmp.eq.s32.totalorder %s16, 0
      %p119 = por %p117, %p118
      %p120 = scmp.ne.s32.totalorder %s108, %s109
      %p121 = scmp.eq.s32.totalorder %s17, 3
      %p122 = por %p120, %p121
      %p124 = scmp.ne.s32.totalorder %s109, %s123
      %p125 = scmp.eq.s32.totalorder %s17, 0
      %p126 = por %p124, %p125
      %s128 = sadd.s32 %s127, 1
      %p131 = scmp.eq.s32.totalorder %s11, 3
      %p132 = scmp.ne.s32.totalorder %s127, %s129
      %p133 = scmp.eq.s32.totalorder %s11, 0
      %p134 = por %p132, %p133
      %p135 = scmp.ne.s32.totalorder %s127, %s129
      %p136 = scmp.eq.s32.totalorder %s16, 3
      %p137 = por %p135, %p136
      %p138 = scmp.ne.s32.totalorder %s129, %s130
      %p139 = scmp.eq.s32.totalorder %s16, 0
      %p140 = por %p138, %p139
      %p141 = scmp.ne.s32.totalorder %s129, %s130
      %p142 = scmp.eq.s32.totalorder %s17, 3
      %p143 = por %p141, %p142
      %p145 = scmp.ne.s32.totalorder %s130, %s144
      %p146 = scmp.eq.s32.totalorder %s17, 0
      %p147 = por %p145, %p146
      %s148 = ssub.s32 %s18, %s30
      %p149 = scmp.eq.s32.totalorder %s148, 0
      %s151 = sadd.s32 %s150, 1
      %s152 = scalar_select %p149, %s150, %s151
      %p155 = pneg %p149
      %p156 = scmp.eq.s32.totalorder %s11, 3
      %p157 = por %p155, %p156
      %p158 = scmp.ne.s32.totalorder %s150, %s153
      %p159 = scmp.eq.s32.totalorder %s11, 0
      %p160 = por %p158, %p159
      %p161 = scmp.ne.s32.totalorder %s150, %s153
      %p162 = scmp.eq.s32.totalorder %s16, 3
      %p163 = por %p161, %p162
      %p164 = scmp.ne.s32.totalorder %s153, %s154
      %p165 = scmp.eq.s32.totalorder %s16, 0
      %p166 = por %p164, %p165
      %p167 = scmp.ne.s32.totalorder %s153, %s154
      %p168 = scmp.eq.s32.totalorder %s17, 3
      %p169 = por %p167, %p168
      %p171 = scmp.ne.s32.totalorder %s154, %s170
      %p172 = scmp.eq.s32.totalorder %s17, 0
      %p173 = por %p171, %p172
      %p174 = scmp.le.s32.totalorder 1, %s11
      %p175 = scmp.lt.s32.totalorder %s11, 5
      %p176 = pnand %p174, %p175
      %p177 = pneg %p176
      // Predicated region
      $region9: #{hindroid_substitute_forward.1} parent=5 // pred_check
        _
      $region10: #{hindroid_substitute_forward.1} parent=5 // pred_check_branch
        %179 = sbr.rel (%p176) target = $region12
      $region11: #{hindroid_substitute_forward.1} parent=5 // pred_region
        %s180 = ssub.s32 %s11, 1
        // Predicated region
        $region13: #{hindroid_substitute_forward.1} parent=11 // pred_check
          %p181 = pneg %p98
        $region14: #{hindroid_substitute_forward.1} parent=11 // pred_check_branch
          %183 = sbr.rel (%p181) target = $region16
        $region15: #{hindroid_substitute_forward.1} parent=11 // pred_region
          _
        $region16: #{hindroid_substitute_forward.1} parent=11 // pred_fallthru
          _
        // Predicated region
        $region17: #{hindroid_substitute_forward.1} parent=11 // pred_check
          %p184 = pneg %p119
        $region18: #{hindroid_substitute_forward.1} parent=11 // pred_check_branch
          %186 = sbr.rel (%p184) target = $region20
        $region19: #{hindroid_substitute_forward.1} parent=11 // pred_region
          _
        $region20: #{hindroid_substitute_forward.1} parent=11 // pred_fallthru
          _
        // Predicated region
        $region21: #{hindroid_substitute_forward.1} parent=11 // pred_check
          %p187 = pneg %p140
        $region22: #{hindroid_substitute_forward.1} parent=11 // pred_check_branch
          %189 = sbr.rel (%p187) target = $region24
        $region23: #{hindroid_substitute_forward.1} parent=11 // pred_region
          _
        $region24: #{hindroid_substitute_forward.1} parent=11 // pred_fallthru
          _
      $region12: #{hindroid_substitute_forward.1} parent=5 // pred_fallthru
        _
      %p190 = scmp.lt.s32.totalorder %s11, 4
      // Predicated region
      $region25: #{hindroid_substitute_forward.1} parent=5 // pred_check
        %p191 = pneg %p190
      $region26: #{hindroid_substitute_forward.1} parent=5 // pred_check_branch
        %193 = sbr.rel (%p191) target = $region28
      $region27: #{hindroid_substitute_forward.1} parent=5 // pred_region
        // Predicated region
        $region29: #{hindroid_substitute_forward.1} parent=27 // pred_check
          %p194 = pneg %p45
        $region30: #{hindroid_substitute_forward.1} parent=27 // pred_check_branch
          %196 = sbr.rel (%p194) target = $region32
        $region31: #{hindroid_substitute_forward.1} parent=27 // pred_region
          %s197 = smul.u32 4, %s19
          %p198 = scmp.lt.s32.totalorder %s18, 1
          %s199 = scalar_select %p198, %s18, 1
          %p200 = scmp.lt.s32.totalorder %s197, 7
          %s201 = scalar_select %p200, %s197, 7
          %s202 = smul.addr %s199, 8
          %s203 = sadd.s32 %s201, %s202
          %s204 = smul.addr %s203, 8
          %s205 = scalar_lea.vmem %s0, %s204
          %s206 = smul.u32 4, %s19
        $region32: #{hindroid_substitute_forward.1} parent=27 // pred_fallthru
          _
        // Predicated region
        $region33: #{hindroid_substitute_forward.1} parent=27 // pred_check
          %p207 = pneg %p71
        $region34: #{hindroid_substitute_forward.1} parent=27 // pred_check_branch
          %209 = sbr.rel (%p207) target = $region36
        $region35: #{hindroid_substitute_forward.1} parent=27 // pred_region
          %s210 = sand.u32 %s61, 1
          %s211 = sand.u32 %s61, 1
          %s212 = smul.addr %s211, 256
          %s213 = scalar_lea.vmem [#allocation3], %s212
          %s214 = smul.u32 4, %s19
          %s215 = smul.addr %s214, 8
          %s216 = scalar_lea.vmem %s1, %s215
          // Predicated region
          $region37: #{hindroid_substitute_forward.1} parent=35 // pred_check
            _
          $region38: #{hindroid_substitute_forward.1} parent=35 // pred_check_branch
            %218 = sbr.rel (0) target = $region40
          $region39: #{hindroid_substitute_forward.1} parent=35 // pred_region
            // Predicated region
            $region41: #{hindroid_substitute_forward.1} parent=39 // pred_check
              _
            $region42: #{hindroid_substitute_forward.1} parent=39 // pred_check_branch
              %220 = sbr.rel (0) target = $region44
            $region43: #{hindroid_substitute_forward.1} parent=39 // pred_region
              loop: start=0, step=1, limit=1
              $region45: #{hindroid_substitute_forward.1} parent=43 // loop_pre_header
                _
              $region46: #{hindroid_substitute_forward.1} parent=43 // loop_header
                %s222 = sphi 0, %s226
                %p223 = scmp.ge.s32.totalorder %s222, 1
                %s227 = sphi %s216, %s216
                %s228 = sphi %s213, %s213
              $region47: #{hindroid_substitute_forward.1} parent=43 // loop_header_branch
                %225 = sbr.rel (%p223) target = $region51
              $region48: #{hindroid_substitute_forward.1} parent=43 // loop_body
                %v229 = vld [vmem:[%s227] sm:$0xff]
                %230 = vst [vmem:[%s228] sm:$0xff] %v229
                %v231 = vld [vmem:[%s227 + $0x8] sm:$0xff]
                %232 = vst [vmem:[%s228 + $0x8] sm:$0xff] %v231
                %v233 = vld [vmem:[%s227 + $0x10] sm:$0xff]
                %234 = vst [vmem:[%s228 + $0x10] sm:$0xff] %v233
                %v235 = vld [vmem:[%s227 + $0x18] sm:$0xff]
                %236 = vst [vmem:[%s228 + $0x18] sm:$0xff] %v235
                %v237 = vld [vmem:[%s227 + $0x40] sm:$0xff]
                %238 = vst [vmem:[%s228 + $0x20] sm:$0xff] %v237
                %v239 = vld [vmem:[%s227 + $0x48] sm:$0xff]
                %240 = vst [vmem:[%s228 + $0x28] sm:$0xff] %v239
                %v241 = vld [vmem:[%s227 + $0x50] sm:$0xff]
                %242 = vst [vmem:[%s228 + $0x30] sm:$0xff] %v241
                %v243 = vld [vmem:[%s227 + $0x58] sm:$0xff]
                %244 = vst [vmem:[%s228 + $0x38] sm:$0xff] %v243
                %v245 = vld [vmem:[%s227 + $0x80] sm:$0xff]
                %246 = vst [vmem:[%s228 + $0x40] sm:$0xff] %v245
                %v247 = vld [vmem:[%s227 + $0x88] sm:$0xff]
                %248 = vst [vmem:[%s228 + $0x48] sm:$0xff] %v247
                %v249 = vld [vmem:[%s227 + $0x90] sm:$0xff]
                %250 = vst [vmem:[%s228 + $0x50] sm:$0xff] %v249
                %v251 = vld [vmem:[%s227 + $0x98] sm:$0xff]
                %252 = vst [vmem:[%s228 + $0x58] sm:$0xff] %v251
                %v253 = vld [vmem:[%s227 + $0xc0] sm:$0xff]
                %254 = vst [vmem:[%s228 + $0x60] sm:$0xff] %v253
                %v255 = vld [vmem:[%s227 + $0xc8] sm:$0xff]
                %256 = vst [vmem:[%s228 + $0x68] sm:$0xff] %v255
                %v257 = vld [vmem:[%s227 + $0xd0] sm:$0xff]
                %258 = vst [vmem:[%s228 + $0x70] sm:$0xff] %v257
                %v259 = vld [vmem:[%s227 + $0xd8] sm:$0xff]
                %260 = vst [vmem:[%s228 + $0x78] sm:$0xff] %v259
                %v261 = vld [vmem:[%s227 + $0x100] sm:$0xff]
                %262 = vst [vmem:[%s228 + $0x80] sm:$0xff] %v261
                %v263 = vld [vmem:[%s227 + $0x108] sm:$0xff]
                %264 = vst [vmem:[%s228 + $0x88] sm:$0xff] %v263
                %v265 = vld [vmem:[%s227 + $0x110] sm:$0xff]
                %266 = vst [vmem:[%s228 + $0x90] sm:$0xff] %v265
                %v267 = vld [vmem:[%s227 + $0x118] sm:$0xff]
                %268 = vst [vmem:[%s228 + $0x98] sm:$0xff] %v267
                %v269 = vld [vmem:[%s227 + $0x140] sm:$0xff]
                %270 = vst [vmem:[%s228 + $0xa0] sm:$0xff] %v269
                %v271 = vld [vmem:[%s227 + $0x148] sm:$0xff]
                %272 = vst [vmem:[%s228 + $0xa8] sm:$0xff] %v271
                %v273 = vld [vmem:[%s227 + $0x150] sm:$0xff]
                %274 = vst [vmem:[%s228 + $0xb0] sm:$0xff] %v273
                %v275 = vld [vmem:[%s227 + $0x158] sm:$0xff]
                %276 = vst [vmem:[%s228 + $0xb8] sm:$0xff] %v275
                %v277 = vld [vmem:[%s227 + $0x180] sm:$0xff]
                %278 = vst [vmem:[%s228 + $0xc0] sm:$0xff] %v277
                %v279 = vld [vmem:[%s227 + $0x188] sm:$0xff]
                %280 = vst [vmem:[%s228 + $0xc8] sm:$0xff] %v279
                %v281 = vld [vmem:[%s227 + $0x190] sm:$0xff]
                %282 = vst [vmem:[%s228 + $0xd0] sm:$0xff] %v281
                %v283 = vld [vmem:[%s227 + $0x198] sm:$0xff]
                %284 = vst [vmem:[%s228 + $0xd8] sm:$0xff] %v283
                %v285 = vld [vmem:[%s227 + $0x1c0] sm:$0xff]
                %286 = vst [vmem:[%s228 + $0xe0] sm:$0xff] %v285
                %v287 = vld [vmem:[%s227 + $0x1c8] sm:$0xff]
                %288 = vst [vmem:[%s228 + $0xe8] sm:$0xff] %v287
                %v289 = vld [vmem:[%s227 + $0x1d0] sm:$0xff]
                %290 = vst [vmem:[%s228 + $0xf0] sm:$0xff] %v289
                %v291 = vld [vmem:[%s227 + $0x1d8] sm:$0xff]
                %292 = vst [vmem:[%s228 + $0xf8] sm:$0xff] %v291
              $region49: #{hindroid_substitute_forward.1} parent=43 // loop_footer
                %s226 = sadd.s32 1, %s222
              $region50: #{hindroid_substitute_forward.1} parent=43 // loop_footer_branch
                %221 = sbr.rel target = $region46
              $region51: #{hindroid_substitute_forward.1} parent=43 // loop_exit
                _
            $region44: #{hindroid_substitute_forward.1} parent=39 // pred_fallthru
              _
            // Predicated region
            $region52: #{hindroid_substitute_forward.1} parent=39 // pred_check
              _
            $region53: #{hindroid_substitute_forward.1} parent=39 // pred_check_branch
              %294 = sbr.rel target = $region55
            $region54: #{hindroid_substitute_forward.1} parent=39 // pred_region
              _
            $region55: #{hindroid_substitute_forward.1} parent=39 // pred_fallthru
              _
          $region40: #{hindroid_substitute_forward.1} parent=35 // pred_fallthru
            _
          %295 = vnop
        $region36: #{hindroid_substitute_forward.1} parent=27 // pred_fallthru
          _
      $region28: #{hindroid_substitute_forward.1} parent=5 // pred_fallthru
        _
      %p296 = scmp.le.s32.totalorder 1, %s11
      %p297 = scmp.lt.s32.totalorder %s11, 5
      %p298 = pnand %p296, %p297
      %p299 = pneg %p298
      // Predicated region
      $region56: #{hindroid_substitute_forward.1} parent=5 // pred_check
        _
      $region57: #{hindroid_substitute_forward.1} parent=5 // pred_check_branch
        %301 = sbr.rel (%p298) target = $region59
      $region58: #{hindroid_substitute_forward.1} parent=5 // pred_region
        %s302 = ssub.s32 %s11, 1
        %s303 = sand.u32 %s64, 1
        %s304 = sand.u32 %s64, 1
        %s305 = smul.addr %s304, 256
        %s306 = scalar_lea.vmem [#allocation3], %s305
        // Predicated region
        $region60: #{hindroid_substitute_forward.1} parent=58 // pred_check
          %p307 = pneg %p77
        $region61: #{hindroid_substitute_forward.1} parent=58 // pred_check_branch
          %309 = sbr.rel (%p307) target = $region63
        $region62: #{hindroid_substitute_forward.1} parent=58 // pred_region
          _
        $region63: #{hindroid_substitute_forward.1} parent=58 // pred_fallthru
          _
        %s310 = smul.u32 4, %s21
        %p311 = scmp.lt.s32.totalorder %s20, 1
        %s312 = scalar_select %p311, %s20, 1
        %p313 = scmp.lt.s32.totalorder %s310, 7
        %s314 = scalar_select %p313, %s310, 7
        %s315 = smul.addr %s312, 8
        %s316 = sadd.s32 %s314, %s315
        %s317 = smul.addr %s316, 8
        %s318 = scalar_lea.vmem %s0, %s317
        %p319 = pneg %p51
        %p320 = pneg %p48
        %s321 = sand.u32 %s64, 1
        %s322 = sand.u32 %s64, 1
        %s323 = smul.addr %s322, 256
        %s324 = scalar_lea.vmem [#allocation3], %s323
        %p325 = pneg %p77
        %p326 = pneg %p74
        %p327 = pneg %p98
        %p328 = pneg %p95
        %p329 = pneg %p119
        %p330 = pneg %p116
        %p331 = pneg %p140
        %p332 = pneg %p137
        %p333 = pneg %p166
        %p334 = pneg %p163
        %p335 = scmp.lt.s32.totalorder %s20, 1
        %s336 = scalar_select %p335, %s20, 1
        %s337 = smul.addr %s336, 8
        %s338 = scalar_lea.vmem %s5, %s337
        %s339 = smul.u32 4, %s21
        %p340 = scmp.lt.s32.totalorder %s20, 1
        %s341 = scalar_select %p340, %s20, 1
        %p342 = scmp.lt.s32.totalorder %s339, 7
        %s343 = scalar_select %p342, %s339, 7
        %s344 = smul.addr %s341, 8
        %s345 = sadd.s32 %s343, %s344
        %s346 = smul.addr %s345, 8
        %s347 = scalar_lea.vmem %s0, %s346
        %s348 = smul.u32 4, %s21
        %s349 = smul.u32 4, %s21
        %p350 = scmp.lt.s32.totalorder %s20, 1
        %s351 = scalar_select %p350, %s20, 1
        %s352 = smul.addr %s351, 8
        %s353 = scalar_lea.vmem %s5, %s352
        %p354 = scmp.eq.s32.totalorder %s21, 0
        // Predicated region
        $region64: #{hindroid_substitute_forward.1} parent=58 // pred_check
          %p355 = pneg %p354
        $region65: #{hindroid_substitute_forward.1} parent=58 // pred_check_branch
          %357 = sbr.rel (%p355) target = $region67
        $region66: #{hindroid_substitute_forward.1} parent=58 // pred_region
          %vm358 = vcmask 523264
          %359 = vst.msk [vmem:[#allocation2] sm:$0xff] %vm358, 0.0
        $region67: #{hindroid_substitute_forward.1} parent=58 // pred_fallthru
          _
        %v360 = vld [vmem:[#allocation2] sm:$0xff]
        %v361 = vld [vmem:[%s347] sm:$0xff]
        %v362 = vld [vmem:[%s347 + $0x8] sm:$0xff]
        %v363 = vld [vmem:[%s347 + $0x10] sm:$0xff]
        %v364 = vld [vmem:[%s347 + $0x18] sm:$0xff]
        %v365 = vld [vmem:[%s306] sm:$0xff]
        %v366 = vld [vmem:[%s306 + $0x8] sm:$0xff]
        %v367 = vld [vmem:[%s306 + $0x10] sm:$0xff]
        %v368 = vld [vmem:[%s306 + $0x18] sm:$0xff]
        %v369 = vld [vmem:[%s306 + $0x20] sm:$0xff]
        %v370 = vld [vmem:[%s306 + $0x28] sm:$0xff]
        %v371 = vld [vmem:[%s306 + $0x30] sm:$0xff]
        %v372 = vld [vmem:[%s306 + $0x38] sm:$0xff]
        %v373 = vld [vmem:[%s306 + $0x40] sm:$0xff]
        %v374 = vld [vmem:[%s306 + $0x48] sm:$0xff]
        %v375 = vld [vmem:[%s306 + $0x50] sm:$0xff]
        %v376 = vld [vmem:[%s306 + $0x58] sm:$0xff]
        %v377 = vld [vmem:[%s306 + $0x60] sm:$0xff]
        %v378 = vld [vmem:[%s306 + $0x68] sm:$0xff]
        %v379 = vld [vmem:[%s306 + $0x70] sm:$0xff]
        %v380 = vld [vmem:[%s306 + $0x78] sm:$0xff]
        %v381 = vld [vmem:[%s306 + $0x80] sm:$0xff]
        %v382 = vld [vmem:[%s306 + $0x88] sm:$0xff]
        %v383 = vld [vmem:[%s306 + $0x90] sm:$0xff]
        %v384 = vld [vmem:[%s306 + $0x98] sm:$0xff]
        %v385 = vld [vmem:[%s306 + $0xa0] sm:$0xff]
        %v386 = vld [vmem:[%s306 + $0xa8] sm:$0xff]
        %v387 = vld [vmem:[%s306 + $0xb0] sm:$0xff]
        %v388 = vld [vmem:[%s306 + $0xb8] sm:$0xff]
        %v389 = vld [vmem:[%s306 + $0xc0] sm:$0xff]
        %v390 = vld [vmem:[%s306 + $0xc8] sm:$0xff]
        %v391 = vld [vmem:[%s306 + $0xd0] sm:$0xff]
        %v392 = vld [vmem:[%s306 + $0xd8] sm:$0xff]
        %v393 = vld [vmem:[%s306 + $0xe0] sm:$0xff]
        %v394 = vld [vmem:[%s306 + $0xe8] sm:$0xff]
        %v395 = vld [vmem:[%s306 + $0xf0] sm:$0xff]
        %v396 = vld [vmem:[%s306 + $0xf8] sm:$0xff]
        %397 = vmatpush.xpose.msra.mxu0 0.0
        %398 = vmatpush.xpose.msra.mxu0 0.0
        %399 = vmatpush.xpose.msra.mxu0 0.0
        %400 = vmatpush.xpose.msra.mxu0 0.0
        %401 = vmatpush.xpose.msra.mxu0 0.0
        %402 = vmatpush.xpose.msra.mxu0 0.0
        %403 = vmatpush.xpose.msra.mxu0 0.0
        %404 = vmatpush.xpose.msra.mxu0 0.0
        %405 = vmatpush.xpose.msra.mxu0 %v393
        %406 = vmatpush.xpose.msra.mxu0 %v389
        %407 = vmatpush.xpose.msra.mxu0 %v385
        %408 = vmatpush.xpose.msra.mxu0 %v381
        %409 = vmatpush.xpose.msra.mxu0 %v377
        %410 = vmatpush.xpose.msra.mxu0 %v373
        %411 = vmatpush.xpose.msra.mxu0 %v369
        %412 = vmatpush.xpose.msra.mxu0 %v365
        %413 = vmatmul.f32.gmra.mxu0 %v361
        %v414 = vpop.f32.mrf.mxu0
        %v415 = vadd.f32 0.0, %v414
        %416 = vdwg.mxu0
        %417 = vmatpush.xpose.msra.mxu0 0.0
        %418 = vmatpush.xpose.msra.mxu0 0.0
        %419 = vmatpush.xpose.msra.mxu0 0.0
        %420 = vmatpush.xpose.msra.mxu0 0.0
        %421 = vmatpush.xpose.msra.mxu0 0.0
        %422 = vmatpush.xpose.msra.mxu0 0.0
        %423 = vmatpush.xpose.msra.mxu0 0.0
        %424 = vmatpush.xpose.msra.mxu0 0.0
        %425 = vmatpush.xpose.msra.mxu0 %v394
        %426 = vmatpush.xpose.msra.mxu0 %v390
        %427 = vmatpush.xpose.msra.mxu0 %v386
        %428 = vmatpush.xpose.msra.mxu0 %v382
        %429 = vmatpush.xpose.msra.mxu0 %v378
        %430 = vmatpush.xpose.msra.mxu0 %v374
        %431 = vmatpush.xpose.msra.mxu0 %v370
        %432 = vmatpush.xpose.msra.mxu0 %v366
        %433 = vmatmul.f32.gmra.mxu0 %v362
        %v434 = vpop.f32.mrf.mxu0
        %v435 = vadd.f32 %v415, %v434
        %436 = vdwg.mxu0
        %437 = vmatpush.xpose.msra.mxu0 0.0
        %438 = vmatpush.xpose.msra.mxu0 0.0
        %439 = vmatpush.xpose.msra.mxu0 0.0
        %440 = vmatpush.xpose.msra.mxu0 0.0
        %441 = vmatpush.xpose.msra.mxu0 0.0
        %442 = vmatpush.xpose.msra.mxu0 0.0
        %443 = vmatpush.xpose.msra.mxu0 0.0
        %444 = vmatpush.xpose.msra.mxu0 0.0
        %445 = vmatpush.xpose.msra.mxu0 %v395
        %446 = vmatpush.xpose.msra.mxu0 %v391
        %447 = vmatpush.xpose.msra.mxu0 %v387
        %448 = vmatpush.xpose.msra.mxu0 %v383
        %449 = vmatpush.xpose.msra.mxu0 %v379
        %450 = vmatpush.xpose.msra.mxu0 %v375
        %451 = vmatpush.xpose.msra.mxu0 %v371
        %452 = vmatpush.xpose.msra.mxu0 %v367
        %453 = vmatmul.f32.gmra.mxu0 %v363
        %v454 = vpop.f32.mrf.mxu0
        %v455 = vadd.f32 %v435, %v454
        %456 = vdwg.mxu0
        %457 = vmatpush.xpose.msra.mxu0 0.0
        %458 = vmatpush.xpose.msra.mxu0 0.0
        %459 = vmatpush.xpose.msra.mxu0 0.0
        %460 = vmatpush.xpose.msra.mxu0 0.0
        %461 = vmatpush.xpose.msra.mxu0 0.0
        %462 = vmatpush.xpose.msra.mxu0 0.0
        %463 = vmatpush.xpose.msra.mxu0 0.0
        %464 = vmatpush.xpose.msra.mxu0 0.0
        %465 = vmatpush.xpose.msra.mxu0 %v396
        %466 = vmatpush.xpose.msra.mxu0 %v392
        %467 = vmatpush.xpose.msra.mxu0 %v388
        %468 = vmatpush.xpose.msra.mxu0 %v384
        %469 = vmatpush.xpose.msra.mxu0 %v380
        %470 = vmatpush.xpose.msra.mxu0 %v376
        %471 = vmatpush.xpose.msra.mxu0 %v372
        %472 = vmatpush.xpose.msra.mxu0 %v368
        %473 = vmatmul.f32.gmra.mxu0 %v364
        %v474 = vpop.f32.mrf.mxu0
        %v475 = vadd.f32 %v455, %v474
        %476 = vdwg.mxu0
        %v477 = vadd.f32 %v360, %v475
        %vm478 = vcmask 523264
        %479 = vst.msk [vmem:[#allocation2] sm:$0xff] %vm478, %v477
        %p480 = scmp.eq.s32.totalorder %s21, 1
        // Predicated region
        $region68: #{hindroid_substitute_forward.1} parent=58 // pred_check
          %p481 = pneg %p480
        $region69: #{hindroid_substitute_forward.1} parent=58 // pred_check_branch
          %483 = sbr.rel (%p481) target = $region71
        $region70: #{hindroid_substitute_forward.1} parent=58 // pred_region
          %v484 = vld [vmem:[#allocation2] sm:$0xff]
          %v485 = vmax.f32 %v484, 0.0
          %v486 = vld [vmem:[%s2] sm:$0xff]
          %v487 = vld [vmem:[%s2 + $0x8] sm:$0xff]
          %v488 = vld [vmem:[%s2 + $0x10] sm:$0xff]
          %v489 = vld [vmem:[%s2 + $0x18] sm:$0xff]
          %v490 = vld [vmem:[%s2 + $0x20] sm:$0xff]
          %v491 = vld [vmem:[%s2 + $0x28] sm:$0xff]
          %v492 = vld [vmem:[%s2 + $0x30] sm:$0xff]
          %v493 = vld [vmem:[%s2 + $0x38] sm:$0xff]
          %v495 = vsel %vm478, %v485, 0
          %v498 = vsel %vm478, %v486, 0
          %v501 = vsel %vm478, %v487, 0
          %v504 = vsel %vm478, %v488, 0
          %v507 = vsel %vm478, %v489, 0
          %v510 = vsel %vm478, %v490, 0
          %v513 = vsel %vm478, %v491, 0
          %v516 = vsel %vm478, %v492, 0
          %v519 = vsel %vm478, %v493, 0
          %521 = vmatpush.xpose.msra.mxu0 0.0
          %522 = vmatpush.xpose.msra.mxu0 0.0
          %523 = vmatpush.xpose.msra.mxu0 0.0
          %524 = vmatpush.xpose.msra.mxu0 0.0
          %525 = vmatpush.xpose.msra.mxu0 0.0
          %526 = vmatpush.xpose.msra.mxu0 0.0
          %527 = vmatpush.xpose.msra.mxu0 0.0
          %528 = vmatpush.xpose.msra.mxu0 0.0
          %529 = vmatpush.xpose.msra.mxu0 %v519
          %530 = vmatpush.xpose.msra.mxu0 %v516
          %531 = vmatpush.xpose.msra.mxu0 %v513
          %532 = vmatpush.xpose.msra.mxu0 %v510
          %533 = vmatpush.xpose.msra.mxu0 %v507
          %534 = vmatpush.xpose.msra.mxu0 %v504
          %535 = vmatpush.xpose.msra.mxu0 %v501
          %536 = vmatpush.xpose.msra.mxu0 %v498
          %537 = vmatmul.f32.gmra.mxu0 %v495
          %v538 = vpop.f32.mrf.mxu0
          %v539 = vadd.f32 0.0, %v538
          %540 = vdwg.mxu0
          %v541 = vmax.f32 %v539, 0.0
          %v542 = vld [vmem:[%s3] sm:$0xff]
          %v543 = vld [vmem:[%s3 + $0x8] sm:$0xff]
          %v544 = vld [vmem:[%s3 + $0x10] sm:$0xff]
          %v545 = vld [vmem:[%s3 + $0x18] sm:$0xff]
          %v546 = vld [vmem:[%s3 + $0x20] sm:$0xff]
          %v547 = vld [vmem:[%s3 + $0x28] sm:$0xff]
          %v548 = vld [vmem:[%s3 + $0x30] sm:$0xff]
          %v549 = vld [vmem:[%s3 + $0x38] sm:$0xff]
          %v551 = vsel %vm478, %v541, 0
          %v554 = vsel %vm478, %v542, 0
          %v557 = vsel %vm478, %v543, 0
          %v560 = vsel %vm478, %v544, 0
          %v563 = vsel %vm478, %v545, 0
          %v566 = vsel %vm478, %v546, 0
          %v569 = vsel %vm478, %v547, 0
          %v572 = vsel %vm478, %v548, 0
          %v575 = vsel %vm478, %v549, 0
          %577 = vmatpush.xpose.msra.mxu0 0.0
          %578 = vmatpush.xpose.msra.mxu0 0.0
          %579 = vmatpush.xpose.msra.mxu0 0.0
          %580 = vmatpush.xpose.msra.mxu0 0.0
          %581 = vmatpush.xpose.msra.mxu0 0.0
          %582 = vmatpush.xpose.msra.mxu0 0.0
          %583 = vmatpush.xpose.msra.mxu0 0.0
          %584 = vmatpush.xpose.msra.mxu0 0.0
          %585 = vmatpush.xpose.msra.mxu0 %v575
          %586 = vmatpush.xpose.msra.mxu0 %v572
          %587 = vmatpush.xpose.msra.mxu0 %v569
          %588 = vmatpush.xpose.msra.mxu0 %v566
          %589 = vmatpush.xpose.msra.mxu0 %v563
          %590 = vmatpush.xpose.msra.mxu0 %v560
          %591 = vmatpush.xpose.msra.mxu0 %v557
          %592 = vmatpush.xpose.msra.mxu0 %v554
          %593 = vmatmul.f32.gmra.mxu0 %v551
          %v594 = vpop.f32.mrf.mxu0
          %v595 = vadd.f32 0.0, %v594
          %596 = vdwg.mxu0
          %v597 = vmax.f32 %v595, 0.0
          %v598 = vld [vmem:[%s4] sm:$0xff]
          %v599 = vld [vmem:[%s4 + $0x8] sm:$0xff]
          %v600 = vld [vmem:[%s4 + $0x10] sm:$0xff]
          %v601 = vld [vmem:[%s4 + $0x18] sm:$0xff]
          %v602 = vld [vmem:[%s4 + $0x20] sm:$0xff]
          %v603 = vld [vmem:[%s4 + $0x28] sm:$0xff]
          %v604 = vld [vmem:[%s4 + $0x30] sm:$0xff]
          %v605 = vld [vmem:[%s4 + $0x38] sm:$0xff]
          %v606 = vld [vmem:[%s4 + $0x40] sm:$0xff]
          %v607 = vld [vmem:[%s4 + $0x48] sm:$0xff]
          %v608 = vld [vmem:[%s4 + $0x50] sm:$0xff]
          %v609 = vld [vmem:[%s4 + $0x58] sm:$0xff]
          %v610 = vld [vmem:[%s4 + $0x60] sm:$0xff]
          %v611 = vld [vmem:[%s4 + $0x68] sm:$0xff]
          %v612 = vld [vmem:[%s4 + $0x70] sm:$0xff]
          %v613 = vld [vmem:[%s4 + $0x78] sm:$0xff]
          %v615 = vsel %vm478, %v597, 0
          %v618 = vsel %vm478, %v598, 0
          %v621 = vsel %vm478, %v599, 0
          %v624 = vsel %vm478, %v600, 0
          %v627 = vsel %vm478, %v601, 0
          %v630 = vsel %vm478, %v602, 0
          %v633 = vsel %vm478, %v603, 0
          %v636 = vsel %vm478, %v604, 0
          %v639 = vsel %vm478, %v605, 0
          %v642 = vsel %vm478, %v606, 0
          %v645 = vsel %vm478, %v607, 0
          %v648 = vsel %vm478, %v608, 0
          %v651 = vsel %vm478, %v609, 0
          %v654 = vsel %vm478, %v610, 0
          %v657 = vsel %vm478, %v611, 0
          %v660 = vsel %vm478, %v612, 0
          %v663 = vsel %vm478, %v613, 0
          %665 = vmatpush.xpose.msra.mxu0 %v663
          %666 = vmatpush.xpose.msra.mxu0 %v660
          %667 = vmatpush.xpose.msra.mxu0 %v657
          %668 = vmatpush.xpose.msra.mxu0 %v654
          %669 = vmatpush.xpose.msra.mxu0 %v651
          %670 = vmatpush.xpose.msra.mxu0 %v648
          %671 = vmatpush.xpose.msra.mxu0 %v645
          %672 = vmatpush.xpose.msra.mxu0 %v642
          %673 = vmatpush.xpose.msra.mxu0 %v639
          %674 = vmatpush.xpose.msra.mxu0 %v636
          %675 = vmatpush.xpose.msra.mxu0 %v633
          %676 = vmatpush.xpose.msra.mxu0 %v630
          %677 = vmatpush.xpose.msra.mxu0 %v627
          %678 = vmatpush.xpose.msra.mxu0 %v624
          %679 = vmatpush.xpose.msra.mxu0 %v621
          %680 = vmatpush.xpose.msra.mxu0 %v618
          %681 = vmatmul.f32.gmra.mxu0 %v615
          %v682 = vpop.f32.mrf.mxu0
          %v683 = vadd.f32 0.0, %v682
          %684 = vdwg.mxu0
          %685 = vst [vmem:[%s353] sm:$0xff] %v683
        $region71: #{hindroid_substitute_forward.1} parent=58 // pred_fallthru
          _
        %p686 = scmp.lt.s32.totalorder %s20, 1
        %s687 = scalar_select %p686, %s20, 1
        %s688 = smul.addr %s687, 8
        %s689 = scalar_lea.vmem %s5, %s688
        // Predicated region
        $region72: #{hindroid_substitute_forward.1} parent=58 // pred_check
          %p690 = pneg %p163
        $region73: #{hindroid_substitute_forward.1} parent=58 // pred_check_branch
          %692 = sbr.rel (%p690) target = $region75
        $region74: #{hindroid_substitute_forward.1} parent=58 // pred_region
          _
        $region75: #{hindroid_substitute_forward.1} parent=58 // pred_fallthru
          _
      $region59: #{hindroid_substitute_forward.1} parent=5 // pred_fallthru
        _
      %p693 = scmp.le.s32.totalorder 2, %s11
      // Predicated region
      $region76: #{hindroid_substitute_forward.1} parent=5 // pred_check
        %p694 = pneg %p693
      $region77: #{hindroid_substitute_forward.1} parent=5 // pred_check_branch
        %696 = sbr.rel (%p694) target = $region79
      $region78: #{hindroid_substitute_forward.1} parent=5 // pred_region
        %s697 = ssub.s32 %s11, 2
        // Predicated region
        $region80: #{hindroid_substitute_forward.1} parent=78 // pred_check
          %p698 = pneg %p169
        $region81: #{hindroid_substitute_forward.1} parent=78 // pred_check_branch
          %700 = sbr.rel (%p698) target = $region83
        $region82: #{hindroid_substitute_forward.1} parent=78 // pred_region
          %p701 = scmp.lt.s32.totalorder %s22, 1
          %s702 = scalar_select %p701, %s22, 1
          %s703 = smul.addr %s702, 8
          %s704 = scalar_lea.vmem %s5, %s703
        $region83: #{hindroid_substitute_forward.1} parent=78 // pred_fallthru
          _
      $region79: #{hindroid_substitute_forward.1} parent=5 // pred_fallthru
        _
    $region6: #{hindroid_substitute_forward.1} parent=1 // loop_footer
      %s15 = sadd.s32 1, %s11
    $region7: #{hindroid_substitute_forward.1} parent=1 // loop_footer_branch
      %10 = sbr.rel target = $region3
    $region8: #{hindroid_substitute_forward.1} parent=1 // loop_exit
      _

</llo_original>
